<compile_context>
chip_gen: v7x
topology: tpu7x:2x2x1
jax: 0.10.0
libtpu: 0.0.40
codegen_flags: <defaults>
</compile_context>

<pallas_src>
import numpy as np
import jax
import jax.numpy as jnp
from jax.experimental import pallas as pl
from jax.experimental.pallas import tpu as pltpu

BN_EPS = 1e-5


def qnet4_kernel(xa_ref, w_ref, v_ref, out_ref):
    # xa_ref: (B, 32)  = [x (24) | a (4) | zero-pad (4)]
    # w_ref : (224, 128) weight slab:
    #           rows   0: 32, lanes 0: 64  -> block-diag [fc_s | fc_a] (28 used)
    #           rows  32: 96, lanes 0:128  -> fc_q   (64,128)
    #           rows  96:224, lanes 0: 16  -> fc_out (128,16)
    # v_ref : (8, 128) vector slab:
    #           row 0 lanes 0:64 -> [bs | ba], row 1 -> g1, row 2 -> be1,
    #           row 3 lanes 0:16 -> g2, row 4 -> be2, row 5 -> wo2 row,
    #           row 6 lane 0 -> bo2
    xa = xa_ref[...]

    wsa = w_ref[0:32, 0:64]
    wq = w_ref[32:96, :]
    wo = w_ref[96:224, 0:16]

    bsa = v_ref[0:1, 0:64]
    g1 = v_ref[1:2, :]
    be1 = v_ref[2:3, :]
    g2 = v_ref[3:4, 0:16]
    be2 = v_ref[4:5, 0:16]
    wo2 = v_ref[5:6, 0:16]
    bo2 = v_ref[6:7, 0:1]

    # cat = concat([relu(fc_s(x)), relu(fc_a(a))]) via one block-diagonal matmul
    cat = jnp.maximum(
        jnp.dot(xa, wsa, preferred_element_type=jnp.float32) + bsa, 0.0)  # (B,64)

    # q = relu(bn1(fc_q(cat)))   -- fc_q bias cancelled by BN mean subtraction
    q = jnp.dot(cat, wq, preferred_element_type=jnp.float32)              # (B,128)
    mu = jnp.mean(q, axis=0, keepdims=True)
    var = jnp.mean(q * q, axis=0, keepdims=True) - mu * mu                # biased var
    q = jnp.maximum((q - mu) * jax.lax.rsqrt(var + BN_EPS) * g1 + be1, 0.0)

    # q = relu(bn2(fc_out(q)))   -- fc_out bias cancelled by BN mean subtraction
    q = jnp.dot(q, wo, preferred_element_type=jnp.float32)                # (B,16)
    mu = jnp.mean(q, axis=0, keepdims=True)
    var = jnp.mean(q * q, axis=0, keepdims=True) - mu * mu
    q = jnp.maximum((q - mu) * jax.lax.rsqrt(var + BN_EPS) * g2 + be2, 0.0)

    # q = fc_out2(q): K=16, N=1 -> VPU multiply + lane reduce (skip the MXU)
    out_ref[...] = (jnp.sum(q * wo2, axis=1, keepdims=True) + bo2).astype(out_ref.dtype)


def pack_params(p):
    """Pack all parameters into one weight slab and one vector slab."""
    # block-diagonal first layer: [x|a|pad](B,32) @ Wsa(32,64) == [x@ws | a@wa]
    wsa = jnp.zeros((32, 64), jnp.float32)
    wsa = wsa.at[0:24, 0:32].set(p["ws"])
    wsa = wsa.at[24:28, 32:64].set(p["wa"])

    W = jnp.zeros((224, 128), jnp.float32)
    W = W.at[0:32, 0:64].set(wsa)
    W = W.at[32:96, :].set(p["wq"])
    W = W.at[96:224, 0:16].set(p["wo"])

    V = jnp.zeros((8, 128), jnp.float32)
    V = V.at[0, 0:32].set(p["bs"][0])
    V = V.at[0, 32:64].set(p["ba"][0])
    V = V.at[1, :].set(p["g1"][0])
    V = V.at[2, :].set(p["be1"][0])
    V = V.at[3, 0:16].set(p["g2"][0])
    V = V.at[4, 0:16].set(p["be2"][0])
    V = V.at[5, 0:16].set(p["wo2"][:, 0])
    V = V.at[6, 0].set(p["bo2"][0, 0])
    return W, V


def qnet4_forward(x, a, W, V):
    B = x.shape[0]
    # pad [x|a] (B,28) to (B,32) so every weight-slab slice is sublane-aligned
    xa = jnp.concatenate([x, a, jnp.zeros((B, 4), x.dtype)], axis=1)
    vmem = pl.BlockSpec(memory_space=pltpu.MemorySpace.VMEM)
    return pl.pallas_call(
        qnet4_kernel,
        out_shape=jax.ShapeDtypeStruct((B, 1), jnp.float32),
        in_specs=[vmem, vmem, vmem],
        out_specs=vmem,
    )(xa, W, V)


def init_params(key):
    """Deterministic init mimicking PyTorch Linear defaults (U[-1/sqrt(fan_in), ..])."""
    def linear(key, fan_in, fan_out):
        kw, kb = jax.random.split(key)
        bound = 1.0 / np.sqrt(fan_in)
        w = jax.random.uniform(kw, (fan_in, fan_out), jnp.float32, -bound, bound)
        b = jax.random.uniform(kb, (1, fan_out), jnp.float32, -bound, bound)
        return w, b

    keys = jax.random.split(key, 5)
    ws, bs = linear(keys[0], 24, 32)    # fc_s
    wa, ba = linear(keys[1], 4, 32)     # fc_a
    wq, bq = linear(keys[2], 64, 128)   # fc_q
    wo, bo = linear(keys[3], 128, 16)   # fc_out
    wo2, bo2 = linear(keys[4], 16, 1)   # fc_out2
    return dict(
        ws=ws, bs=bs, wa=wa, ba=ba, wq=wq, bq=bq,
        g1=jnp.ones((1, 128), jnp.float32), be1=jnp.zeros((1, 128), jnp.float32),
        wo=wo, bo=bo,
        g2=jnp.ones((1, 16), jnp.float32), be2=jnp.zeros((1, 16), jnp.float32),
        wo2=wo2, bo2=bo2,
    )


def qnet4_reference(x, a, p):
    """Pure-JAX reference mirroring the *original* PyTorch module (keeps the
    pre-BN biases, two separate first-layer matmuls and the explicit concat)."""
    h1 = jax.nn.relu(x @ p["ws"] + p["bs"])
    h2 = jax.nn.relu(a @ p["wa"] + p["ba"])
    cat = jnp.concatenate([h1, h2], axis=1)

    def bn(v, g, b):
        mu = jnp.mean(v, axis=0, keepdims=True)
        var = jnp.mean((v - mu) ** 2, axis=0, keepdims=True)
        return (v - mu) / jnp.sqrt(var + BN_EPS) * g + b

    q = jax.nn.relu(bn(cat @ p["wq"] + p["bq"], p["g1"], p["be1"]))
    q = jax.nn.relu(bn(q @ p["wo"] + p["bo"], p["g2"], p["be2"]))
    return q @ p["wo2"] + p["bo2"]


if __name__ == "__main__":
    key = jax.random.PRNGKey(0)
    kx, ka, kp = jax.random.split(key, 3)

    B = 8
    x = jax.random.normal(kx, (B, 24), jnp.float32)   # state
    a = jax.random.normal(ka, (B, 4), jnp.float32)    # action
    params = init_params(kp)
    W, V = pack_params(params)

    out = qnet4_forward(x, a, W, V)
    out = jax.block_until_ready(out)

    ref = qnet4_reference(x, a, params)
    np.testing.assert_allclose(np.asarray(out), np.asarray(ref), rtol=1e-4, atol=1e-4)
    assert out.shape == (B, 1)

    print("KERNEL_OK")
</pallas_src>

<mosaic_0001>
module attributes {stable_mosaic.version = 11 : i64} {
  func.func @qnet4_kernel(%arg0: memref<8x32xf32, #tpu.memory_space<vmem>>, %arg1: memref<224x128xf32, #tpu.memory_space<vmem>>, %arg2: memref<8x128xf32, #tpu.memory_space<vmem>>, %arg3: memref<8x1xf32, #tpu.memory_space<vmem>>) attributes {dimension_semantics = [], scalar_prefetch = 0 : i64, scratch_operands = 0 : i64, tpu.core_type = #tpu.core_type<tc>} {
    %c0 = arith.constant 0 : index
    %c0_0 = arith.constant 0 : index
    %0 = vector.load %arg0[%c0, %c0_0] : memref<8x32xf32, #tpu.memory_space<vmem>>, vector<8x32xf32>
    %c0_1 = arith.constant 0 : index
    %c0_2 = arith.constant 0 : index
    %1 = vector.load %arg1[%c0_1, %c0_2] : memref<224x128xf32, #tpu.memory_space<vmem>>, vector<32x64xf32>
    %c32 = arith.constant 32 : index
    %c0_3 = arith.constant 0 : index
    %2 = vector.load %arg1[%c32, %c0_3] : memref<224x128xf32, #tpu.memory_space<vmem>>, vector<64x128xf32>
    %c96 = arith.constant 96 : index
    %c0_4 = arith.constant 0 : index
    %3 = vector.load %arg1[%c96, %c0_4] : memref<224x128xf32, #tpu.memory_space<vmem>>, vector<128x16xf32>
    %c0_5 = arith.constant 0 : index
    %c0_6 = arith.constant 0 : index
    %4 = vector.load %arg2[%c0_5, %c0_6] : memref<8x128xf32, #tpu.memory_space<vmem>>, vector<1x64xf32>
    %c1 = arith.constant 1 : index
    %c0_7 = arith.constant 0 : index
    %5 = vector.load %arg2[%c1, %c0_7] : memref<8x128xf32, #tpu.memory_space<vmem>>, vector<1x128xf32>
    %c2 = arith.constant 2 : index
    %c0_8 = arith.constant 0 : index
    %6 = vector.load %arg2[%c2, %c0_8] : memref<8x128xf32, #tpu.memory_space<vmem>>, vector<1x128xf32>
    %c3 = arith.constant 3 : index
    %c0_9 = arith.constant 0 : index
    %7 = vector.load %arg2[%c3, %c0_9] : memref<8x128xf32, #tpu.memory_space<vmem>>, vector<1x16xf32>
    %c4 = arith.constant 4 : index
    %c0_10 = arith.constant 0 : index
    %8 = vector.load %arg2[%c4, %c0_10] : memref<8x128xf32, #tpu.memory_space<vmem>>, vector<1x16xf32>
    %c5 = arith.constant 5 : index
    %c0_11 = arith.constant 0 : index
    %9 = vector.load %arg2[%c5, %c0_11] : memref<8x128xf32, #tpu.memory_space<vmem>>, vector<1x16xf32>
    %c6 = arith.constant 6 : index
    %c0_12 = arith.constant 0 : index
    %10 = vector.load %arg2[%c6, %c0_12] : memref<8x128xf32, #tpu.memory_space<vmem>>, vector<1x1xf32>
    %cst = arith.constant dense<0.000000e+00> : vector<8x64xf32>
    %11 = tpu.matmul %0, %1, %cst {dimension_numbers = #tpu.dot_dimension_numbers<[1], [0], [0], [1], [0, 0, 1, 1], [], []>} : vector<8x32xf32>, vector<32x64xf32>, vector<8x64xf32> -> vector<8x64xf32>
    %12 = vector.broadcast %4 : vector<1x64xf32> to vector<8x64xf32>
    %13 = arith.addf %11, %12 : vector<8x64xf32>
    %cst_13 = arith.constant 0.000000e+00 : f32
    %14 = vector.broadcast %cst_13 : f32 to vector<8x64xf32>
    %15 = arith.maximumf %13, %14 : vector<8x64xf32>
    %cst_14 = arith.constant dense<0.000000e+00> : vector<8x128xf32>
    %16 = tpu.matmul %15, %2, %cst_14 {dimension_numbers = #tpu.dot_dimension_numbers<[1], [0], [0], [1], [0, 0, 1, 1], [], []>} : vector<8x64xf32>, vector<64x128xf32>, vector<8x128xf32> -> vector<8x128xf32>
    %cst_15 = arith.constant dense<0.000000e+00> : vector<128xf32>
    %17 = vector.multi_reduction <add>, %16, %cst_15 [0] : vector<8x128xf32> to vector<128xf32>
    %18 = vector.shape_cast %17 : vector<128xf32> to vector<1x128xf32>
    %cst_16 = arith.constant 8.000000e+00 : f32
    %19 = vector.broadcast %cst_16 : f32 to vector<1x128xf32>
    %20 = arith.divf %18, %19 : vector<1x128xf32>
    %21 = arith.mulf %16, %16 : vector<8x128xf32>
    %cst_17 = arith.constant dense<0.000000e+00> : vector<128xf32>
    %22 = vector.multi_reduction <add>, %21, %cst_17 [0] : vector<8x128xf32> to vector<128xf32>
    %23 = vector.shape_cast %22 : vector<128xf32> to vector<1x128xf32>
    %cst_18 = arith.constant 8.000000e+00 : f32
    %24 = vector.broadcast %cst_18 : f32 to vector<1x128xf32>
    %25 = arith.divf %23, %24 : vector<1x128xf32>
    %26 = arith.mulf %20, %20 : vector<1x128xf32>
    %27 = arith.subf %25, %26 : vector<1x128xf32>
    %28 = vector.broadcast %20 : vector<1x128xf32> to vector<8x128xf32>
    %29 = arith.subf %16, %28 : vector<8x128xf32>
    %cst_19 = arith.constant 9.99999974E-6 : f32
    %30 = vector.broadcast %cst_19 : f32 to vector<1x128xf32>
    %31 = arith.addf %27, %30 : vector<1x128xf32>
    %32 = math.rsqrt %31 : vector<1x128xf32>
    %33 = vector.broadcast %32 : vector<1x128xf32> to vector<8x128xf32>
    %34 = arith.mulf %29, %33 : vector<8x128xf32>
    %35 = vector.broadcast %5 : vector<1x128xf32> to vector<8x128xf32>
    %36 = arith.mulf %34, %35 : vector<8x128xf32>
    %37 = vector.broadcast %6 : vector<1x128xf32> to vector<8x128xf32>
    %38 = arith.addf %36, %37 : vector<8x128xf32>
    %cst_20 = arith.constant 0.000000e+00 : f32
    %39 = vector.broadcast %cst_20 : f32 to vector<8x128xf32>
    %40 = arith.maximumf %38, %39 : vector<8x128xf32>
    %cst_21 = arith.constant dense<0.000000e+00> : vector<8x16xf32>
    %41 = tpu.matmul %40, %3, %cst_21 {dimension_numbers = #tpu.dot_dimension_numbers<[1], [0], [0], [1], [0, 0, 1, 1], [], []>} : vector<8x128xf32>, vector<128x16xf32>, vector<8x16xf32> -> vector<8x16xf32>
    %cst_22 = arith.constant dense<0.000000e+00> : vector<16xf32>
    %42 = vector.multi_reduction <add>, %41, %cst_22 [0] : vector<8x16xf32> to vector<16xf32>
    %43 = vector.shape_cast %42 : vector<16xf32> to vector<1x16xf32>
    %cst_23 = arith.constant 8.000000e+00 : f32
    %44 = vector.broadcast %cst_23 : f32 to vector<1x16xf32>
    %45 = arith.divf %43, %44 : vector<1x16xf32>
    %46 = arith.mulf %41, %41 : vector<8x16xf32>
    %cst_24 = arith.constant dense<0.000000e+00> : vector<16xf32>
    %47 = vector.multi_reduction <add>, %46, %cst_24 [0] : vector<8x16xf32> to vector<16xf32>
    %48 = vector.shape_cast %47 : vector<16xf32> to vector<1x16xf32>
    %cst_25 = arith.constant 8.000000e+00 : f32
    %49 = vector.broadcast %cst_25 : f32 to vector<1x16xf32>
    %50 = arith.divf %48, %49 : vector<1x16xf32>
    %51 = arith.mulf %45, %45 : vector<1x16xf32>
    %52 = arith.subf %50, %51 : vector<1x16xf32>
    %53 = vector.broadcast %45 : vector<1x16xf32> to vector<8x16xf32>
    %54 = arith.subf %41, %53 : vector<8x16xf32>
    %cst_26 = arith.constant 9.99999974E-6 : f32
    %55 = vector.broadcast %cst_26 : f32 to vector<1x16xf32>
    %56 = arith.addf %52, %55 : vector<1x16xf32>
    %57 = math.rsqrt %56 : vector<1x16xf32>
    %58 = vector.broadcast %57 : vector<1x16xf32> to vector<8x16xf32>
    %59 = arith.mulf %54, %58 : vector<8x16xf32>
    %60 = vector.broadcast %7 : vector<1x16xf32> to vector<8x16xf32>
    %61 = arith.mulf %59, %60 : vector<8x16xf32>
    %62 = vector.broadcast %8 : vector<1x16xf32> to vector<8x16xf32>
    %63 = arith.addf %61, %62 : vector<8x16xf32>
    %cst_27 = arith.constant 0.000000e+00 : f32
    %64 = vector.broadcast %cst_27 : f32 to vector<8x16xf32>
    %65 = arith.maximumf %63, %64 : vector<8x16xf32>
    %66 = vector.broadcast %9 : vector<1x16xf32> to vector<8x16xf32>
    %67 = arith.mulf %65, %66 : vector<8x16xf32>
    %cst_28 = arith.constant dense<0.000000e+00> : vector<8xf32>
    %68 = vector.multi_reduction <add>, %67, %cst_28 [1] : vector<8x16xf32> to vector<8xf32>
    %69 = vector.shape_cast %68 : vector<8xf32> to vector<8x1xf32>
    %70 = vector.broadcast %10 : vector<1x1xf32> to vector<8x1xf32>
    %71 = arith.addf %69, %70 : vector<8x1xf32>
    %c0_29 = arith.constant 0 : index
    %c0_30 = arith.constant 0 : index
    %72 = vector.load %arg3[%c0_29, %c0_30] : memref<8x1xf32, #tpu.memory_space<vmem>>, vector<8x1xf32>
    tpu.vector_store %arg3[%c0_29, %c0_30], %71 {strides = array<i32>} : memref<8x1xf32, #tpu.memory_space<vmem>>, vector<8x1xf32>,
    return
  }
}

</mosaic_0001>

<llo_original>
// kernel: tpu_custom_call.1
$region0: #{tpu_custom_call.1}
  #allocation0 [shape = 'u32[]', space=smem, size = 0x4, offset = 0x4, fixed_abs, tag = 'smem constant byte address 0x4 - core index']
  #allocation1 [shape = 'u32[144,128]{1,0:T(1,128)}', space=vmem, size = 0x12000, scoped, tag = 'internal scratch']
  %s0 = inlined_call_operand.hbm [shape: f32[8,32], index: 0, kind: input, shape index: {}]
  %s1 = inlined_call_operand.hbm [shape: f32[224,128], index: 1, kind: input, shape index: {}]
  %s2 = inlined_call_operand.hbm [shape: f32[8,128], index: 2, kind: input, shape index: {}]
  %s3 = inlined_call_operand.vmem [shape: f32[8,1], index: 3, kind: output, shape index: {}]
  %s4 = sld [smem:[#allocation0]]
  $region34: #{tpu_custom_call.1} parent=0
    _
  %s6 = ssub.s32 1, %s4
  %s7 = scalar_select 0, %s6, %s4
  $region1: #{tpu_custom_call.1} parent=0
    #allocation2 [shape = 'u8[4096]{0}', space=vmem, size = 0x1000, scoped, tag = 'input window, operand 0, single buffered']
    #allocation3 [shape = 's32[1]{0}', space=sflag, size = 0x4, scoped, tag = 'scoped memory for tpu_custom_call.1']
    #allocation4 [shape = 'u8[114688]{0}', space=vmem, size = 0x1c000, scoped, tag = 'input window, operand 1, single buffered']
    #allocation5 [shape = 's32[1]{0}', space=sflag, size = 0x4, scoped, tag = 'scoped memory for tpu_custom_call.1']
    #allocation6 [shape = 'u8[4096]{0}', space=vmem, size = 0x1000, scoped, tag = 'input window, operand 2, single buffered']
    %8 = vsyncpa [#allocation3], 0
    %9 = vsyncpa [#allocation5], 0
    // Predicated region
    $region2: #{tpu_custom_call.1} parent=1 // pred_check
      _
    $region3: #{tpu_custom_call.1} parent=1 // pred_check_branch
      %11 = sbr.rel (0) target = $region5
    $region4: #{tpu_custom_call.1} parent=1 // pred_region
      %s13 = ssub.s32 128, 128
      %14 = vsyncadd [#allocation3], %s13
      %s16 = sshll.u32 [#allocation2], 4
      %s17 = int_to_ptr.vmem [resolvable:$true] %s16
      %19 = dma.hbm_to_vmem [thread:$0]  %s0, 128, %s17, [#allocation3]
    $region5: #{tpu_custom_call.1} parent=1 // pred_fallthru
      _
    // Predicated region
    $region6: #{tpu_custom_call.1} parent=1 // pred_check
      _
    $region7: #{tpu_custom_call.1} parent=1 // pred_check_branch
      %21 = sbr.rel (0) target = $region9
    $region8: #{tpu_custom_call.1} parent=1 // pred_region
      %s23 = ssub.s32 3584, 3584
      %24 = vsyncadd [#allocation5], %s23
      %s25 = sshll.u32 [#allocation4], 4
      %s26 = int_to_ptr.vmem [resolvable:$true] %s25
      %31 = dma.hbm_to_vmem [thread:$0]  %s1, 3584, %s26, [#allocation5], 128, 128, 8
    $region9: #{tpu_custom_call.1} parent=1 // pred_fallthru
      _
    // Predicated region
    $region10: #{tpu_custom_call.1} parent=1 // pred_check
      _
    $region11: #{tpu_custom_call.1} parent=1 // pred_check_branch
      %33 = sbr.rel (0) target = $region13
    $region12: #{tpu_custom_call.1} parent=1 // pred_region
      %s35 = ssub.s32 128, 128
      %36 = vsyncadd [#allocation5], %s35
      %s38 = sshll.u32 [#allocation6], 4
      %s39 = int_to_ptr.vmem [resolvable:$true] %s38
      %41 = dma.hbm_to_vmem [thread:$0]  %s2, 128, %s39, [#allocation5]
    $region13: #{tpu_custom_call.1} parent=1 // pred_fallthru
      _
    // Predicated region
    $region14: #{tpu_custom_call.1} parent=1 // pred_check
      _
    $region15: #{tpu_custom_call.1} parent=1 // pred_check_branch
      %43 = sbr.rel (0) target = $region17
    $region16: #{tpu_custom_call.1} parent=1 // pred_region
      %44 = dma.done [#allocation3], 128
    $region17: #{tpu_custom_call.1} parent=1 // pred_fallthru
      _
    // Predicated region
    $region18: #{tpu_custom_call.1} parent=1 // pred_check
      _
    $region19: #{tpu_custom_call.1} parent=1 // pred_check_branch
      %46 = sbr.rel (0) target = $region21
    $region20: #{tpu_custom_call.1} parent=1 // pred_region
      %47 = dma.done [#allocation5], 3584
    $region21: #{tpu_custom_call.1} parent=1 // pred_fallthru
      _
    // Predicated region
    $region22: #{tpu_custom_call.1} parent=1 // pred_check
      _
    $region23: #{tpu_custom_call.1} parent=1 // pred_check_branch
      %49 = sbr.rel (0) target = $region25
    $region24: #{tpu_custom_call.1} parent=1 // pred_region
      %50 = dma.done [#allocation5], 128
    $region25: #{tpu_custom_call.1} parent=1 // pred_fallthru
      _
    %v51 = vld [vmem:[#allocation2] sm:$0xff]
    %v52 = vld [vmem:[#allocation4] sm:$0xff]
    %v53 = vld [vmem:[#allocation4 + $0x8] sm:$0xff]
    %v54 = vld [vmem:[#allocation4 + $0x10] sm:$0xff]
    %v55 = vld [vmem:[#allocation4 + $0x18] sm:$0xff]
    %v56 = vld [vmem:[#allocation4 + $0x20] sm:$0xff]
    %v57 = vld [vmem:[#allocation4 + $0x28] sm:$0xff]
    %v58 = vld [vmem:[#allocation4 + $0x30] sm:$0xff]
    %v59 = vld [vmem:[#allocation4 + $0x38] sm:$0xff]
    %v60 = vld [vmem:[#allocation4 + $0x40] sm:$0xff]
    %v61 = vld [vmem:[#allocation4 + $0x48] sm:$0xff]
    %v62 = vld [vmem:[#allocation4 + $0x50] sm:$0xff]
    %v63 = vld [vmem:[#allocation4 + $0x58] sm:$0xff]
    %v64 = vld [vmem:[#allocation4 + $0x60] sm:$0xff]
    %v65 = vld [vmem:[#allocation4 + $0x68] sm:$0xff]
    %v66 = vld [vmem:[#allocation4 + $0x70] sm:$0xff]
    %v67 = vld [vmem:[#allocation4 + $0x78] sm:$0xff]
    %v68 = vld [vmem:[#allocation4 + $0x80] sm:$0xff]
    %v69 = vld [vmem:[#allocation4 + $0x88] sm:$0xff]
    %v70 = vld [vmem:[#allocation4 + $0x90] sm:$0xff]
    %v71 = vld [vmem:[#allocation4 + $0x98] sm:$0xff]
    %v72 = vld [vmem:[#allocation4 + $0xa0] sm:$0xff]
    %v73 = vld [vmem:[#allocation4 + $0xa8] sm:$0xff]
    %v74 = vld [vmem:[#allocation4 + $0xb0] sm:$0xff]
    %v75 = vld [vmem:[#allocation4 + $0xb8] sm:$0xff]
    %v76 = vld [vmem:[#allocation4 + $0xc0] sm:$0xff]
    %v77 = vld [vmem:[#allocation4 + $0xc8] sm:$0xff]
    %v78 = vld [vmem:[#allocation4 + $0xd0] sm:$0xff]
    %v79 = vld [vmem:[#allocation4 + $0xd8] sm:$0xff]
    %v80 = vld [vmem:[#allocation6] sm:$0x1]
    %v81 = vld [vmem:[#allocation6 + $0x1] sm:$0x1]
    %v82 = vld [vmem:[#allocation6 + $0x2] sm:$0x1]
    %v83 = vld [vmem:[#allocation6 + $0x3] sm:$0x1]
    %v84 = vld [vmem:[#allocation6 + $0x4] sm:$0x1]
    %v85 = vld [vmem:[#allocation6 + $0x5] sm:$0x1]
    %v86 = vld [vmem:[#allocation6 + $0x6] sm:$0x1]
    %v87 = vlaneseq
    %v88 = vshrl.u32 %v87, 7
    %v89 = vsub.s32 0, %v88
    %v90 = vrot.slane %v80, %v89
    %vm91 = vcmask 261120
    %v93 = vsel %vm91, %v51, 0
    %95 = vmatprep.subr.mxu0 0.0
    %96 = vmatpush1.msra.mxu0 %v52
    %97 = vmatprep.subr.mxu0 0.0
    %98 = vmatpush1.msra.mxu0 %v53
    %99 = vmatprep.subr.mxu0 0.0
    %100 = vmatpush1.msra.mxu0 %v54
    %101 = vmatprep.subr.mxu0 0.0
    %102 = vmatpush1.msra.mxu0 %v55
    %103 = vmatprep.subr.mxu0 0.0
    %104 = vmatpush1.msra.mxu0 0.0
    %105 = vmatprep.subr.mxu0 0.0
    %106 = vmatpush1.msra.mxu0 0.0
    %107 = vmatprep.subr.mxu0 0.0
    %108 = vmatpush1.msra.mxu0 0.0
    %109 = vmatprep.subr.mxu0 0.0
    %110 = vmatpush1.msra.mxu0 0.0
    %111 = vmatprep.subr.mxu0 0.0
    %112 = vmatpush1.msra.mxu0 0.0
    %113 = vmatprep.subr.mxu0 0.0
    %114 = vmatpush1.msra.mxu0 0.0
    %115 = vmatprep.subr.mxu0 0.0
    %116 = vmatpush1.msra.mxu0 0.0
    %117 = vmatprep.subr.mxu0 0.0
    %118 = vmatpush1.msra.mxu0 0.0
    %119 = vmatprep.subr.mxu0 0.0
    %120 = vmatpush1.msra.mxu0 0.0
    %121 = vmatprep.subr.mxu0 0.0
    %122 = vmatpush1.msra.mxu0 0.0
    %123 = vmatprep.subr.mxu0 0.0
    %124 = vmatpush1.msra.mxu0 0.0
    %125 = vmatprep.subr.mxu0 0.0
    %126 = vmatpush1.msra.mxu0 0.0
    %127 = vmatprep.subr.mxu0 0.0
    %128 = vmatpush1.msra.mxu0 0.0
    %129 = vmatprep.subr.mxu0 0.0
    %130 = vmatpush1.msra.mxu0 0.0
    %131 = vmatprep.subr.mxu0 0.0
    %132 = vmatpush1.msra.mxu0 0.0
    %133 = vmatprep.subr.mxu0 0.0
    %134 = vmatpush1.msra.mxu0 0.0
    %135 = vmatprep.subr.mxu0 0.0
    %136 = vmatpush1.msra.mxu0 0.0
    %137 = vmatprep.subr.mxu0 0.0
    %138 = vmatpush1.msra.mxu0 0.0
    %139 = vmatprep.subr.mxu0 0.0
    %140 = vmatpush1.msra.mxu0 0.0
    %141 = vmatprep.subr.mxu0 0.0
    %142 = vmatpush1.msra.mxu0 0.0
    %143 = vmatprep.subr.mxu0 0.0
    %144 = vmatpush1.msra.mxu0 0.0
    %145 = vmatprep.subr.mxu0 0.0
    %146 = vmatpush1.msra.mxu0 0.0
    %147 = vmatprep.subr.mxu0 0.0
    %148 = vmatpush1.msra.mxu0 0.0
    %149 = vmatprep.subr.mxu0 0.0
    %150 = vmatpush1.msra.mxu0 0.0
    %151 = vmatprep.subr.mxu0 0.0
    %152 = vmatpush1.msra.mxu0 0.0
    %153 = vmatprep.subr.mxu0 0.0
    %154 = vmatpush1.msra.mxu0 0.0
    %155 = vmatprep.subr.mxu0 0.0
    %156 = vmatpush1.msra.mxu0 0.0
    %157 = vmatprep.subr.mxu0 0.0
    %158 = vmatpush1.msra.mxu0 0.0
    %159 = vmatprep.mubr.f32.mxu0 0.0
    %160 = vmatmul.mubr.f32.gmra.mrb[0].mxu0 %v93
    %v161 = vpop.f32.mrb[0].mxu0
    %v162 = vadd.f32 %v90, %v161
    %v163 = vpop.f32.mrb[0].mxu0
    %164 = vdwg.mxu0
    %v165 = vmax.f32 %v162, 0.0
    %vm166 = vcmask 523264
    %v168 = vsel %vm166, %v165, 0
    %170 = vmatprep.subr.mxu0 0.0
    %171 = vmatpush1.msra.mxu0 %v56
    %172 = vmatprep.subr.mxu0 0.0
    %173 = vmatpush1.msra.mxu0 %v57
    %174 = vmatprep.subr.mxu0 0.0
    %175 = vmatpush1.msra.mxu0 %v58
    %176 = vmatprep.subr.mxu0 0.0
    %177 = vmatpush1.msra.mxu0 %v59
    %178 = vmatprep.subr.mxu0 0.0
    %179 = vmatpush1.msra.mxu0 %v60
    %180 = vmatprep.subr.mxu0 0.0
    %181 = vmatpush1.msra.mxu0 %v61
    %182 = vmatprep.subr.mxu0 0.0
    %183 = vmatpush1.msra.mxu0 %v62
    %184 = vmatprep.subr.mxu0 0.0
    %185 = vmatpush1.msra.mxu0 %v63
    %186 = vmatprep.subr.mxu0 0.0
    %187 = vmatpush1.msra.mxu0 0.0
    %188 = vmatprep.subr.mxu0 0.0
    %189 = vmatpush1.msra.mxu0 0.0
    %190 = vmatprep.subr.mxu0 0.0
    %191 = vmatpush1.msra.mxu0 0.0
    %192 = vmatprep.subr.mxu0 0.0
    %193 = vmatpush1.msra.mxu0 0.0
    %194 = vmatprep.subr.mxu0 0.0
    %195 = vmatpush1.msra.mxu0 0.0
    %196 = vmatprep.subr.mxu0 0.0
    %197 = vmatpush1.msra.mxu0 0.0
    %198 = vmatprep.subr.mxu0 0.0
    %199 = vmatpush1.msra.mxu0 0.0
    %200 = vmatprep.subr.mxu0 0.0
    %201 = vmatpush1.msra.mxu0 0.0
    %202 = vmatprep.subr.mxu0 0.0
    %203 = vmatpush1.msra.mxu0 0.0
    %204 = vmatprep.subr.mxu0 0.0
    %205 = vmatpush1.msra.mxu0 0.0
    %206 = vmatprep.subr.mxu0 0.0
    %207 = vmatpush1.msra.mxu0 0.0
    %208 = vmatprep.subr.mxu0 0.0
    %209 = vmatpush1.msra.mxu0 0.0
    %210 = vmatprep.subr.mxu0 0.0
    %211 = vmatpush1.msra.mxu0 0.0
    %212 = vmatprep.subr.mxu0 0.0
    %213 = vmatpush1.msra.mxu0 0.0
    %214 = vmatprep.subr.mxu0 0.0
    %215 = vmatpush1.msra.mxu0 0.0
    %216 = vmatprep.subr.mxu0 0.0
    %217 = vmatpush1.msra.mxu0 0.0
    %218 = vmatprep.subr.mxu0 0.0
    %219 = vmatpush1.msra.mxu0 0.0
    %220 = vmatprep.subr.mxu0 0.0
    %221 = vmatpush1.msra.mxu0 0.0
    %222 = vmatprep.subr.mxu0 0.0
    %223 = vmatpush1.msra.mxu0 0.0
    %224 = vmatprep.subr.mxu0 0.0
    %225 = vmatpush1.msra.mxu0 0.0
    %226 = vmatprep.subr.mxu0 0.0
    %227 = vmatpush1.msra.mxu0 0.0
    %228 = vmatprep.subr.mxu0 0.0
    %229 = vmatpush1.msra.mxu0 0.0
    %230 = vmatprep.subr.mxu0 0.0
    %231 = vmatpush1.msra.mxu0 0.0
    %232 = vmatprep.subr.mxu0 0.0
    %233 = vmatpush1.msra.mxu0 0.0
    %234 = vmatprep.mubr.f32.mxu0 0.0
    %235 = vmatmul.mubr.f32.gmra.mrb[0].mxu0 %v168
    %v236 = vpop.f32.mrb[0].mxu0
    %v237 = vadd.f32 0.0, %v236
    %v238 = vpop.f32.mrb[0].mxu0
    %239 = vdwg.mxu0
    %v240 = vrot.slane %v237, 4
    %v241 = vadd.f32 %v237, %v240
    %v242 = vrot.slane %v241, 2
    %v243 = vadd.f32 %v241, %v242
    %v244 = vrot.slane %v243, 1
    %v245 = vadd.f32 %v243, %v244
    %v246 = vrcp.pop 8.0
    %v247 = vmul.f32 %v245, %v246
    %v248 = vmul.f32 %v237, %v237
    %v249 = vrot.slane %v248, 4
    %v250 = vadd.f32 %v248, %v249
    %v251 = vrot.slane %v250, 2
    %v252 = vadd.f32 %v250, %v251
    %v253 = vrot.slane %v252, 1
    %v254 = vadd.f32 %v252, %v253
    %v255 = vmul.f32 %v254, %v246
    %v256 = vmul.f32 %v247, %v247
    %v257 = vsub.f32 %v255, %v256
    %v258 = vsub.f32 %v237, %v247
    %v259 = vadd.f32 %v257, 1e-05
    %v260 = vrsqrt.pop %v259
    %v261 = vmul.f32 %v258, %v260
    %v262 = vlaneseq
    %v263 = vshrl.u32 %v262, 7
    %v264 = vsub.s32 0, %v263
    %v265 = vrot.slane %v81, %v264
    %v266 = vmul.f32 %v261, %v265
    %v267 = vlaneseq
    %v268 = vshrl.u32 %v267, 7
    %v269 = vsub.s32 0, %v268
    %v270 = vrot.slane %v82, %v269
    %v271 = vadd.f32 %v266, %v270
    %v272 = vmax.f32 %v271, 0.0
    %273 = vmatprep.subr.mxu0 0.0
    %274 = vmatpush1.msra.mxu0 %v64
    %275 = vmatprep.subr.mxu0 0.0
    %276 = vmatpush1.msra.mxu0 %v65
    %277 = vmatprep.subr.mxu0 0.0
    %278 = vmatpush1.msra.mxu0 %v66
    %279 = vmatprep.subr.mxu0 0.0
    %280 = vmatpush1.msra.mxu0 %v67
    %281 = vmatprep.subr.mxu0 0.0
    %282 = vmatpush1.msra.mxu0 %v68
    %283 = vmatprep.subr.mxu0 0.0
    %284 = vmatpush1.msra.mxu0 %v69
    %285 = vmatprep.subr.mxu0 0.0
    %286 = vmatpush1.msra.mxu0 %v70
    %287 = vmatprep.subr.mxu0 0.0
    %288 = vmatpush1.msra.mxu0 %v71
    %289 = vmatprep.subr.mxu0 0.0
    %290 = vmatpush1.msra.mxu0 %v72
    %291 = vmatprep.subr.mxu0 0.0
    %292 = vmatpush1.msra.mxu0 %v73
    %293 = vmatprep.subr.mxu0 0.0
    %294 = vmatpush1.msra.mxu0 %v74
    %295 = vmatprep.subr.mxu0 0.0
    %296 = vmatpush1.msra.mxu0 %v75
    %297 = vmatprep.subr.mxu0 0.0
    %298 = vmatpush1.msra.mxu0 %v76
    %299 = vmatprep.subr.mxu0 0.0
    %300 = vmatpush1.msra.mxu0 %v77
    %301 = vmatprep.subr.mxu0 0.0
    %302 = vmatpush1.msra.mxu0 %v78
    %303 = vmatprep.subr.mxu0 0.0
    %304 = vmatpush1.msra.mxu0 %v79
    %305 = vmatprep.subr.mxu0 0.0
    %306 = vmatpush1.msra.mxu0 0.0
    %307 = vmatprep.subr.mxu0 0.0
    %308 = vmatpush1.msra.mxu0 0.0
    %309 = vmatprep.subr.mxu0 0.0
    %310 = vmatpush1.msra.mxu0 0.0
    %311 = vmatprep.subr.mxu0 0.0
    %312 = vmatpush1.msra.mxu0 0.0
    %313 = vmatprep.subr.mxu0 0.0
    %314 = vmatpush1.msra.mxu0 0.0
    %315 = vmatprep.subr.mxu0 0.0
    %316 = vmatpush1.msra.mxu0 0.0
    %317 = vmatprep.subr.mxu0 0.0
    %318 = vmatpush1.msra.mxu0 0.0
    %319 = vmatprep.subr.mxu0 0.0
    %320 = vmatpush1.msra.mxu0 0.0
    %321 = vmatprep.subr.mxu0 0.0
    %322 = vmatpush1.msra.mxu0 0.0
    %323 = vmatprep.subr.mxu0 0.0
    %324 = vmatpush1.msra.mxu0 0.0
    %325 = vmatprep.subr.mxu0 0.0
    %326 = vmatpush1.msra.mxu0 0.0
    %327 = vmatprep.subr.mxu0 0.0
    %328 = vmatpush1.msra.mxu0 0.0
    %329 = vmatprep.subr.mxu0 0.0
    %330 = vmatpush1.msra.mxu0 0.0
    %331 = vmatprep.subr.mxu0 0.0
    %332 = vmatpush1.msra.mxu0 0.0
    %333 = vmatprep.subr.mxu0 0.0
    %334 = vmatpush1.msra.mxu0 0.0
    %335 = vmatprep.subr.mxu0 0.0
    %336 = vmatpush1.msra.mxu0 0.0
    %337 = vmatprep.mubr.f32.mxu0 0.0
    %338 = vmatmul.mubr.f32.gmra.mrb[0].mxu0 %v272
    %v339 = vpop.f32.mrb[0].mxu0
    %v340 = vadd.f32 0.0, %v339
    %v341 = vpop.f32.mrb[0].mxu0
    %342 = vdwg.mxu0
    %vm343 = vcmask 130048
    %v344 = vsel %vm343, %v340, 0.0
    %v345 = vrot.slane %v344, 4
    %v346 = vadd.f32 %v344, %v345
    %v347 = vrot.slane %v346, 2
    %v348 = vadd.f32 %v346, %v347
    %v349 = vrot.slane %v348, 1
    %v350 = vadd.f32 %v348, %v349
    %v351 = vmul.f32 %v350, %v246
    %v352 = vmul.f32 %v340, %v340
    %v353 = vsel %vm343, %v352, 0.0
    %v354 = vrot.slane %v353, 4
    %v355 = vadd.f32 %v353, %v354
    %v356 = vrot.slane %v355, 2
    %v357 = vadd.f32 %v355, %v356
    %v358 = vrot.slane %v357, 1
    %v359 = vadd.f32 %v357, %v358
    %v360 = vmul.f32 %v359, %v246
    %v361 = vmul.f32 %v351, %v351
    %v362 = vsub.f32 %v360, %v361
    %v363 = vsub.f32 %v340, %v351
    %v364 = vadd.f32 %v362, 1e-05
    %v365 = vrsqrt.pop %v364
    %v366 = vmul.f32 %v363, %v365
    %v367 = vlaneseq
    %v368 = vshrl.u32 %v367, 7
    %v369 = vsub.s32 0, %v368
    %v370 = vrot.slane %v83, %v369
    %v371 = vmul.f32 %v366, %v370
    %v372 = vlaneseq
    %v373 = vshrl.u32 %v372, 7
    %v374 = vsub.s32 0, %v373
    %v375 = vrot.slane %v84, %v374
    %v376 = vadd.f32 %v371, %v375
    %v377 = vmax.f32 %v376, 0.0
    %v378 = vlaneseq
    %v379 = vshrl.u32 %v378, 7
    %v380 = vsub.s32 0, %v379
    %v381 = vrot.slane %v85, %v380
    %v382 = vmul.f32 %v377, %v381
    %v383 = vsel %vm343, %v382, 0.0
    %384 = vadd.xlane.f32.xlu0 %v383
    %v385 = vpop.xlane.xlu0 %384
    %v386 = vlaneseq
    %v387 = vshrl.u32 %v386, 7
    %v388 = vsub.s32 0, %v387
    %v389 = vrot.slane %v86, %v388
    %v390 = vadd.f32 %v385, %v389
    %vm391 = vcmask 7168
    %392 = vst.msk [vmem:[%s3] sm:$0xff] %vm391, %v390
    // Predicated region
    $region26: #{tpu_custom_call.1} parent=1 // pred_check
      _
    $region27: #{tpu_custom_call.1} parent=1 // pred_check_branch
      %394 = sbr.rel (0) target = $region29
    $region28: #{tpu_custom_call.1} parent=1 // pred_region
      _
    $region29: #{tpu_custom_call.1} parent=1 // pred_fallthru
      _
    // Predicated region
    $region30: #{tpu_custom_call.1} parent=1 // pred_check
      _
    $region31: #{tpu_custom_call.1} parent=1 // pred_check_branch
      %396 = sbr.rel (0) target = $region33
    $region32: #{tpu_custom_call.1} parent=1 // pred_region
      _
    $region33: #{tpu_custom_call.1} parent=1 // pred_fallthru
      _
    %397 = vsyncpa [#allocation3], 1
    %398 = vsyncpa [#allocation5], 1

</llo_original>
